<compile_context>
chip_gen: v7x
topology: tpu7x:2x2x1
jax: 0.10.0
libtpu: 0.0.40
codegen_flags: <defaults>
</compile_context>

<pallas_src>
import functools

import jax
import jax.numpy as jnp
from jax.experimental import pallas as pl
from jax.experimental.pallas import tpu as pltpu


# ---------------------------------------------------------------------------
# Generation-aware VMEM budgeting
# ---------------------------------------------------------------------------
def _vmem_budgets():
    """Returns (vmem_limit_bytes, per-block byte budget) for this TPU gen."""
    try:
        vmem_phys = int(pltpu.get_tpu_info().vmem_capacity_bytes)
    except Exception:
        vmem_phys = 64 << 20          # conservative default (v7x per-TC VMEM)
    # Leave headroom for the compiler's own scratch; cap at 96 MiB.
    vmem_limit = min((vmem_phys * 3) // 4, 96 << 20)
    # Residency in kernel 2 is ~4x the x-block (x + out, double-buffered)
    # plus the small alpha block -> budget a block at ~1/5 of the limit.
    # v7x (64 MiB):  limit ~48 MiB, block ~9.6 MiB.
    # v5e/v6e (128): limit  96 MiB, block  12  MiB.
    block_budget = min(vmem_limit // 5, 12 << 20)
    return vmem_limit, block_budget


# ---------------------------------------------------------------------------
# Bilinear interpolation matrices (match torch.nn.functional.interpolate)
# ---------------------------------------------------------------------------
def _bilinear_matrix(in_size: int, out_size: int, align_corners: bool):
    """(out_size, in_size) 1-D bilinear interpolation matrix."""
    if align_corners:
        if out_size == 1:
            src = jnp.zeros((1,), jnp.float32)
        else:
            src = jnp.arange(out_size, dtype=jnp.float32) * (
                (in_size - 1) / (out_size - 1)
            )
    else:
        scale = in_size / out_size
        src = (jnp.arange(out_size, dtype=jnp.float32) + 0.5) * scale - 0.5
    src = jnp.clip(src, 0.0, float(in_size - 1))
    lo = jnp.floor(src).astype(jnp.int32)
    hi = jnp.minimum(lo + 1, in_size - 1)
    frac = src - lo.astype(jnp.float32)
    rows = jnp.arange(out_size)
    mat = jnp.zeros((out_size, in_size), jnp.float32)
    mat = mat.at[rows, lo].add(1.0 - frac)
    mat = mat.at[rows, hi].add(frac)
    return mat


# ---------------------------------------------------------------------------
# Pallas kernel 1: fused (two 1x1 convs) / ReLU / psi / sigmoid -> alpha
#   g_ref  : (1, Cg, P)    gating-signal channels, pixels on lanes
#   x_ref  : (1, Cin, P)   resized skip-feature channels, pixels on lanes
#   wg_ref : (Cint, Cg)    wg 1x1-conv weight (transposed)
#   wl_ref : (Cint, Cin)   wl 1x1-conv weight (transposed)
#   b_ref  : (Cint, 1)     bg + bl (pre-summed)
#   wp_ref : (1, Cint) MXU path  /  (Cint, 1) VPU path
#   bp_ref : (1, 1)        psi bias
#   o_ref  : (1, 1, P)     alpha, lane-dense
# ---------------------------------------------------------------------------
def _attn_coef_kernel(g_ref, x_ref, wg_ref, wl_ref, b_ref, wp_ref, bp_ref,
                      o_ref, *, psi_on_mxu):
    g = g_ref[0]                                                   # (Cg,  P)
    x = x_ref[0]                                                   # (Cin, P)
    inter = (jnp.dot(wg_ref[...], g, preferred_element_type=jnp.float32)
             + jnp.dot(wl_ref[...], x, preferred_element_type=jnp.float32)
             + b_ref[...])
    inter = jnp.maximum(inter, 0.0)                                # ReLU
    if psi_on_mxu:
        # Production Cint: keep psi on the (otherwise idle) MXU slot.
        psi = jnp.dot(wp_ref[...], inter,
                      preferred_element_type=jnp.float32) + bp_ref[...]
    else:
        # Tiny Cint: VPU multiply + sublane reduce is cheaper than an MXU pass.
        psi = jnp.sum(inter * wp_ref[...], axis=0, keepdims=True) + bp_ref[...]
    o_ref[...] = jax.nn.sigmoid(psi)[None].astype(o_ref.dtype)     # (1,1,P)


def _attention_coefficients(g3, x3r, wgT, wlT, b_col, wp, bp, *,
                            vmem_limit_bytes, block_budget_bytes, psi_on_mxu):
    """g3: (N, Cg, HWg), x3r: (N, Cin, HWg) -> alpha (N, 1, HWg) f32."""
    N, Cg, HWg = g3.shape
    _, Cin, _ = x3r.shape
    Cint = wgT.shape[0]
    in_item = jnp.dtype(g3.dtype).itemsize

    # Adaptive lane-dense pixel tile (v5e-safe): double-buffered g+x inputs,
    # the (Cint, P) f32 intermediate, and the double-buffered f32 output.
    per_lane = 2 * (Cg + Cin) * in_item + Cint * 4 + 2 * 4
    max_p = max(128, min((block_budget_bytes // per_lane) // 128 * 128, 8192))
    P = HWg if HWg <= max_p else max_p

    kernel = functools.partial(_attn_coef_kernel, psi_on_mxu=psi_on_mxu)
    return pl.pallas_call(
        kernel,
        out_shape=jax.ShapeDtypeStruct((N, 1, HWg), jnp.float32),
        grid_spec=pltpu.PrefetchScalarGridSpec(
            num_scalar_prefetch=0,
            grid=(N, pl.cdiv(HWg, P)),
            in_specs=[
                pl.BlockSpec((1, Cg, P), lambda n, t: (n, 0, t)),
                pl.BlockSpec((1, Cin, P), lambda n, t: (n, 0, t)),
                pl.BlockSpec((Cint, Cg), lambda n, t: (0, 0)),
                pl.BlockSpec((Cint, Cin), lambda n, t: (0, 0)),
                pl.BlockSpec((Cint, 1), lambda n, t: (0, 0)),
                pl.BlockSpec(wp.shape, lambda n, t: (0, 0)),
                pl.BlockSpec((1, 1), lambda n, t: (0, 0)),
            ],
            out_specs=pl.BlockSpec((1, 1, P), lambda n, t: (n, 0, t)),
        ),
        compiler_params=pltpu.CompilerParams(
            dimension_semantics=("parallel", "parallel"),
            vmem_limit_bytes=vmem_limit_bytes),
    )(g3, x3r, wgT, wlT, b_col, wp, bp)


# ---------------------------------------------------------------------------
# Pallas kernel 2: broadcasted gating multiply  out = x * alpha  (NCHW layout)
#   x_ref : (1, TC, THW)   one batch, channel tile, lane-dense spatial tile
#   a_ref : (1, 1, THW)    alpha row broadcast over channels (f32)
# ---------------------------------------------------------------------------
def _gate_mul_kernel(x_ref, a_ref, o_ref):
    # alpha stays f32 on HBM; cast happens in-kernel (free VPU work) instead
    # of a separate wrapper-side XLA pass.
    o_ref[...] = (x_ref[...].astype(jnp.float32) * a_ref[...]).astype(o_ref.dtype)


def _gated_multiply(x3, a3, *, vmem_limit_bytes, block_budget_bytes):
    """x3: (N, C, H*W), a3: (N, 1, H*W) f32 -> (N, C, H*W) in x3.dtype."""
    N, C, HW = x3.shape
    item = jnp.dtype(x3.dtype).itemsize
    max_elems = max(8 * 128, block_budget_bytes // item)

    if C * 128 <= max_elems:
        TC = C
        max_thw = max(128, (max_elems // C) // 128 * 128)
        THW = HW if HW <= max_thw else max_thw
    else:
        # Very large C: tile channels too (multiple-of-8 blocks; ragged tail
        # is masked by Pallas).
        THW = HW if HW <= 128 else 128
        TC = max(8, (max_elems // max(THW, 128)) // 8 * 8)
        if TC >= C:
            TC = C

    return pl.pallas_call(
        _gate_mul_kernel,
        out_shape=jax.ShapeDtypeStruct((N, C, HW), x3.dtype),
        grid_spec=pltpu.PrefetchScalarGridSpec(
            num_scalar_prefetch=0,
            grid=(N, pl.cdiv(C, TC), pl.cdiv(HW, THW)),
            in_specs=[
                pl.BlockSpec((1, TC, THW), lambda n, c, t: (n, c, t)),
                pl.BlockSpec((1, 1, THW), lambda n, c, t: (n, 0, t)),
            ],
            out_specs=pl.BlockSpec((1, TC, THW), lambda n, c, t: (n, c, t)),
        ),
        compiler_params=pltpu.CompilerParams(
            dimension_semantics=("parallel", "parallel", "parallel"),
            vmem_limit_bytes=vmem_limit_bytes),
    )(x3, a3)


# ---------------------------------------------------------------------------
# AttentionGate forward
# ---------------------------------------------------------------------------
def attention_gate(gating_signal, input_features, params,
                   conv_dtype=jnp.bfloat16):
    """gating_signal: (N, Cg, Hg, Wg), input_features: (N, Cin, Hin, Win)."""
    N, Cg, Hg, Wg = gating_signal.shape
    _, Cin, Hin, Win = input_features.shape
    Cint = params['wg_w'].shape[1]
    HWg = Hg * Wg
    HW = Hin * Win
    f32 = jnp.float32
    vmem_limit, block_budget = _vmem_budgets()

    # F.interpolate(input_features, size=(Hg, Wg), mode='bilinear',
    #               align_corners=False) as separable matmuls on NCHW.
    # This reads full-resolution x from HBM (~half of kernel-2's traffic);
    # the bf16 output halves the x_rs writeback and kernel-1 read.
    # TODO(synk): gather/matmul bilinear resize kept as plain-JAX glue.
    Rh = _bilinear_matrix(Hin, Hg, align_corners=False)
    Rw = _bilinear_matrix(Win, Wg, align_corners=False)
    x_rs = jnp.einsum('oh,nchw->ncow', Rh, input_features.astype(f32))
    x_rs = jnp.einsum('ow,nchw->ncho', Rw, x_rs)            # (N, Cin, Hg, Wg)
    x_rs = x_rs.astype(conv_dtype)

    # Kernel-1 inputs: NO HBM concat -- g and resized-x go in separately,
    # weights stay as two matrices, biases are pre-summed.  bf16 MXU inputs,
    # f32 accumulation.
    g3 = gating_signal.reshape(N, Cg, HWg).astype(conv_dtype)
    x3r = x_rs.reshape(N, Cin, HWg)
    wgT = params['wg_w'].T.astype(conv_dtype)               # (Cint, Cg)
    wlT = params['wl_w'].T.astype(conv_dtype)               # (Cint, Cin)
    b_col = (params['wg_b'] + params['wl_b']).reshape(-1, 1).astype(f32)
    bp = params['psi_b'].reshape(1, 1).astype(f32)

    psi_on_mxu = Cint >= 64
    wp = (params['psi_w'].reshape(1, Cint).astype(f32) if psi_on_mxu
          else params['psi_w'].reshape(Cint, 1).astype(f32))

    alpha = _attention_coefficients(
        g3, x3r, wgT, wlT, b_col, wp, bp,
        vmem_limit_bytes=vmem_limit, block_budget_bytes=block_budget,
        psi_on_mxu=psi_on_mxu)
    alpha = alpha.reshape(N, Hg, Wg)

    # torch branch: upsample alpha (align_corners=True) when shapes differ.
    # The align_corners=True interpolation matrices are exact identities when
    # sizes already match, so applying them unconditionally is equivalent.
    # TODO(synk): upsample kept as tiny plain-JAX einsums; fusing it into
    # kernel 2 (Uh_rows @ alpha @ Uw^T in-kernel) would drop the alpha_up
    # HBM round-trip at shallow U-Net levels.
    Uh = _bilinear_matrix(Hg, Hin, align_corners=True)      # (Hin, Hg)
    Uw = _bilinear_matrix(Wg, Win, align_corners=True)      # (Win, Wg)
    alpha_up = jnp.einsum('ih,nhw->niw', Uh, alpha)
    alpha_up = jnp.einsum('jw,nhw->nhj', Uw, alpha_up)      # (N, Hin, Win) f32

    # No wrapper-side dtype cast of alpha_up: kernel 2 casts in-register.
    out3 = _gated_multiply(input_features.reshape(N, Cin, HW),
                           alpha_up.reshape(N, 1, HW),
                           vmem_limit_bytes=vmem_limit,
                           block_budget_bytes=block_budget)
    return out3.reshape(N, Cin, Hin, Win)


# ---------------------------------------------------------------------------
# Pure-JAX reference (mirrors the PyTorch forward) for self-check
# ---------------------------------------------------------------------------
def attention_gate_ref(gating_signal, input_features, params):
    N, Cg, Hg, Wg = gating_signal.shape
    _, Cin, Hin, Win = input_features.shape
    Rh = _bilinear_matrix(Hin, Hg, False)
    Rw = _bilinear_matrix(Win, Wg, False)
    xr = jnp.einsum('oh,nchw->ncow', Rh, input_features)
    xr = jnp.einsum('ow,nchw->ncho', Rw, xr)
    inter = (jnp.einsum('nchw,ck->nkhw', gating_signal, params['wg_w'])
             + params['wg_b'][None, :, None, None]
             + jnp.einsum('nchw,ck->nkhw', xr, params['wl_w'])
             + params['wl_b'][None, :, None, None])
    inter = jax.nn.relu(inter)
    alpha = jax.nn.sigmoid(jnp.einsum('nkhw,ko->nohw', inter, params['psi_w'])
                           + params['psi_b'][None, :, None, None])
    if alpha.shape != input_features.shape:
        Uh = _bilinear_matrix(Hg, Hin, True)
        Uw = _bilinear_matrix(Wg, Win, True)
        alpha = jnp.einsum('ih,nohw->noiw', Uh, alpha)
        alpha = jnp.einsum('jw,nohw->nohj', Uw, alpha)
    return alpha * input_features


if __name__ == "__main__":
    key = jax.random.PRNGKey(0)
    N, Cin, Cg, Cint = 2, 4, 8, 16
    Hin = Win = 16          # encoder skip-connection resolution
    Hg = Wg = 8             # coarser gating-signal resolution

    ks = jax.random.split(key, 8)
    gating = jax.random.normal(ks[0], (N, Cg, Hg, Wg), jnp.float32)
    xin = jax.random.normal(ks[1], (N, Cin, Hin, Win), jnp.float32)

    # Conv2d 1x1 weights stored as (Cin, Cout) matrices (transposed 1x1 kernels).
    params = {
        'wg_w': 0.1 * jax.random.normal(ks[2], (Cg, Cint), jnp.float32),
        'wg_b': 0.1 * jax.random.normal(ks[3], (Cint,), jnp.float32),
        'wl_w': 0.1 * jax.random.normal(ks[4], (Cin, Cint), jnp.float32),
        'wl_b': 0.1 * jax.random.normal(ks[5], (Cint,), jnp.float32),
        'psi_w': 0.1 * jax.random.normal(ks[6], (Cint, 1), jnp.float32),
        'psi_b': 0.1 * jax.random.normal(ks[7], (1,), jnp.float32),
    }

    ref = attention_gate_ref(gating, xin, params)

    # f32 conv path: exact match against the reference.
    out_f32 = attention_gate(gating, xin, params, conv_dtype=jnp.float32)
    jax.block_until_ready(out_f32)
    assert out_f32.shape == xin.shape
    assert jnp.allclose(out_f32, ref, atol=1e-5, rtol=1e-5), "f32 mismatch"

    # Default bf16 conv path (production): small quantization error expected.
    out = attention_gate(gating, xin, params)
    jax.block_until_ready(out)
    assert out.shape == xin.shape
    assert jnp.allclose(out, ref, atol=2e-2, rtol=2e-2), "bf16 mismatch"

    print("KERNEL_OK")
</pallas_src>

<mosaic_0001>
module attributes {stable_mosaic.version = 11 : i64} {
  func.func @_attn_coef_kernel(%arg0: i32, %arg1: i32, %arg2: memref<1x8x64xf32, #tpu.memory_space<vmem>>, %arg3: memref<1x4x64xf32, #tpu.memory_space<vmem>>, %arg4: memref<16x8xf32, #tpu.memory_space<vmem>>, %arg5: memref<16x4xf32, #tpu.memory_space<vmem>>, %arg6: memref<16x1xf32, #tpu.memory_space<vmem>>, %arg7: memref<16x1xf32, #tpu.memory_space<vmem>>, %arg8: memref<1x1xf32, #tpu.memory_space<vmem>>, %arg9: memref<1x1x64xf32, #tpu.memory_space<vmem>>) attributes {dimension_semantics = [#tpu.dimension_semantics<parallel>, #tpu.dimension_semantics<parallel>], iteration_bounds = array<i64: 2, 1>, scalar_prefetch = 0 : i64, scratch_operands = 0 : i64, tpu.core_type = #tpu.core_type<tc>, window_params = [{transform_indices = @transform_0, window_bounds = array<i64: 1, 8, 64>}, {transform_indices = @transform_1, window_bounds = array<i64: 1, 4, 64>}, {pipeline_mode = #tpu.pipeline_mode<synchronous>, transform_indices = @transform_2, window_bounds = array<i64: 16, 8>}, {pipeline_mode = #tpu.pipeline_mode<synchronous>, transform_indices = @transform_3, window_bounds = array<i64: 16, 4>}, {pipeline_mode = #tpu.pipeline_mode<synchronous>, transform_indices = @transform_4, window_bounds = array<i64: 16, 1>}, {pipeline_mode = #tpu.pipeline_mode<synchronous>, transform_indices = @transform_5, window_bounds = array<i64: 16, 1>}, {pipeline_mode = #tpu.pipeline_mode<synchronous>, transform_indices = @transform_6, window_bounds = array<i64: 1, 1>}, {transform_indices = @transform_7, window_bounds = array<i64: 1, 1, 64>}]} {
    %c0 = arith.constant 0 : index
    %c0_0 = arith.constant 0 : index
    %c0_1 = arith.constant 0 : index
    %0 = vector.load %arg2[%c0, %c0_0, %c0_1] : memref<1x8x64xf32, #tpu.memory_space<vmem>>, vector<1x8x64xf32>
    %1 = vector.shape_cast %0 : vector<1x8x64xf32> to vector<8x64xf32>
    %c0_2 = arith.constant 0 : index
    %c0_3 = arith.constant 0 : index
    %c0_4 = arith.constant 0 : index
    %2 = vector.load %arg3[%c0_2, %c0_3, %c0_4] : memref<1x4x64xf32, #tpu.memory_space<vmem>>, vector<1x4x64xf32>
    %3 = vector.shape_cast %2 : vector<1x4x64xf32> to vector<4x64xf32>
    %c0_5 = arith.constant 0 : index
    %c0_6 = arith.constant 0 : index
    %4 = vector.load %arg4[%c0_5, %c0_6] : memref<16x8xf32, #tpu.memory_space<vmem>>, vector<16x8xf32>
    %cst = arith.constant dense<0.000000e+00> : vector<16x64xf32>
    %5 = tpu.matmul %4, %1, %cst {dimension_numbers = #tpu.dot_dimension_numbers<[1], [0], [0], [1], [0, 0, 1, 1], [], []>} : vector<16x8xf32>, vector<8x64xf32>, vector<16x64xf32> -> vector<16x64xf32>
    %c0_7 = arith.constant 0 : index
    %c0_8 = arith.constant 0 : index
    %6 = vector.load %arg5[%c0_7, %c0_8] : memref<16x4xf32, #tpu.memory_space<vmem>>, vector<16x4xf32>
    %cst_9 = arith.constant dense<0.000000e+00> : vector<16x64xf32>
    %7 = tpu.matmul %6, %3, %cst_9 {dimension_numbers = #tpu.dot_dimension_numbers<[1], [0], [0], [1], [0, 0, 1, 1], [], []>} : vector<16x4xf32>, vector<4x64xf32>, vector<16x64xf32> -> vector<16x64xf32>
    %8 = arith.addf %5, %7 : vector<16x64xf32>
    %c0_10 = arith.constant 0 : index
    %c0_11 = arith.constant 0 : index
    %9 = vector.load %arg6[%c0_10, %c0_11] : memref<16x1xf32, #tpu.memory_space<vmem>>, vector<16x1xf32>
    %10 = vector.broadcast %9 : vector<16x1xf32> to vector<16x64xf32>
    %11 = arith.addf %8, %10 : vector<16x64xf32>
    %cst_12 = arith.constant 0.000000e+00 : f32
    %12 = vector.broadcast %cst_12 : f32 to vector<16x64xf32>
    %13 = arith.maximumf %11, %12 : vector<16x64xf32>
    %c0_13 = arith.constant 0 : index
    %c0_14 = arith.constant 0 : index
    %14 = vector.load %arg7[%c0_13, %c0_14] : memref<16x1xf32, #tpu.memory_space<vmem>>, vector<16x1xf32>
    %15 = vector.broadcast %14 : vector<16x1xf32> to vector<16x64xf32>
    %16 = arith.mulf %13, %15 : vector<16x64xf32>
    %cst_15 = arith.constant dense<0.000000e+00> : vector<64xf32>
    %17 = vector.multi_reduction <add>, %16, %cst_15 [0] : vector<16x64xf32> to vector<64xf32>
    %18 = vector.shape_cast %17 : vector<64xf32> to vector<1x64xf32>
    %c0_16 = arith.constant 0 : index
    %c0_17 = arith.constant 0 : index
    %19 = vector.load %arg8[%c0_16, %c0_17] : memref<1x1xf32, #tpu.memory_space<vmem>>, vector<1x1xf32>
    %20 = vector.broadcast %19 : vector<1x1xf32> to vector<1x64xf32>
    %21 = arith.addf %18, %20 : vector<1x64xf32>
    %22 = arith.negf %21 : vector<1x64xf32>
    %23 = math.exp %22 : vector<1x64xf32>
    %cst_18 = arith.constant 1.000000e+00 : f32
    %24 = vector.broadcast %cst_18 : f32 to vector<1x64xf32>
    %25 = arith.addf %24, %23 : vector<1x64xf32>
    %26 = arith.divf %24, %25 : vector<1x64xf32>
    %27 = vector.shape_cast %26 : vector<1x64xf32> to vector<1x1x64xf32>
    %c0_19 = arith.constant 0 : index
    %c0_20 = arith.constant 0 : index
    %c0_21 = arith.constant 0 : index
    %28 = vector.load %arg9[%c0_19, %c0_20, %c0_21] : memref<1x1x64xf32, #tpu.memory_space<vmem>>, vector<1x1x64xf32>
    tpu.vector_store %arg9[%c0_19, %c0_20, %c0_21], %27 {strides = array<i32>} : memref<1x1x64xf32, #tpu.memory_space<vmem>>, vector<1x1x64xf32>,
    return
  }
  func.func @transform_0(%arg0: i32, %arg1: i32) -> (i32, i32, i32) {
    %c0_i32 = arith.constant 0 : i32
    %c0_i32_0 = arith.constant 0 : i32
    return %arg0, %c0_i32, %arg1 : i32, i32, i32
  }
  func.func @transform_1(%arg0: i32, %arg1: i32) -> (i32, i32, i32) {
    %c0_i32 = arith.constant 0 : i32
    %c0_i32_0 = arith.constant 0 : i32
    return %arg0, %c0_i32, %arg1 : i32, i32, i32
  }
  func.func @transform_2(%arg0: i32, %arg1: i32) -> (i32, i32) {
    %c0_i32 = arith.constant 0 : i32
    %c0_i32_0 = arith.constant 0 : i32
    %c0_i32_1 = arith.constant 0 : i32
    return %c0_i32, %c0_i32_0 : i32, i32
  }
  func.func @transform_3(%arg0: i32, %arg1: i32) -> (i32, i32) {
    %c0_i32 = arith.constant 0 : i32
    %c0_i32_0 = arith.constant 0 : i32
    %c0_i32_1 = arith.constant 0 : i32
    return %c0_i32, %c0_i32_0 : i32, i32
  }
  func.func @transform_4(%arg0: i32, %arg1: i32) -> (i32, i32) {
    %c0_i32 = arith.constant 0 : i32
    %c0_i32_0 = arith.constant 0 : i32
    %c0_i32_1 = arith.constant 0 : i32
    return %c0_i32, %c0_i32_0 : i32, i32
  }
  func.func @transform_5(%arg0: i32, %arg1: i32) -> (i32, i32) {
    %c0_i32 = arith.constant 0 : i32
    %c0_i32_0 = arith.constant 0 : i32
    %c0_i32_1 = arith.constant 0 : i32
    return %c0_i32, %c0_i32_0 : i32, i32
  }
  func.func @transform_6(%arg0: i32, %arg1: i32) -> (i32, i32) {
    %c0_i32 = arith.constant 0 : i32
    %c0_i32_0 = arith.constant 0 : i32
    %c0_i32_1 = arith.constant 0 : i32
    return %c0_i32, %c0_i32_0 : i32, i32
  }
  func.func @transform_7(%arg0: i32, %arg1: i32) -> (i32, i32, i32) {
    %c0_i32 = arith.constant 0 : i32
    %c0_i32_0 = arith.constant 0 : i32
    return %arg0, %c0_i32, %arg1 : i32, i32, i32
  }
}

</mosaic_0001>

<llo_original>
// kernel: tpu_custom_call.1
$region0: #{tpu_custom_call.1}
  #allocation0 [shape = 'u32[]', space=smem, size = 0x4, offset = 0x4, fixed_abs, tag = 'smem constant byte address 0x4 - core index']
  #allocation1 [shape = 'u32[144,128]{1,0:T(1,128)}', space=vmem, size = 0x12000, scoped, tag = 'internal scratch']
  #allocation2 [shape = 'f32[1,1]{1,0:T(1,128)S(1)}', space=vmem, size = 0x200, scoped, tag = 'scoped memory for tpu_custom_call.1']
  %s0 = inlined_call_operand.vmem [shape: f32[2,8,64], index: 0, kind: input, shape index: {}]
  %s1 = inlined_call_operand.vmem [shape: f32[2,4,64], index: 1, kind: input, shape index: {}]
  %s2 = inlined_call_operand.vmem [shape: f32[16,8], index: 2, kind: input, shape index: {}]
  %s3 = inlined_call_operand.vmem [shape: f32[16,4], index: 3, kind: input, shape index: {}]
  %s4 = inlined_call_operand.vmem [shape: f32[16,1], index: 4, kind: input, shape index: {}]
  %s5 = inlined_call_operand.vmem [shape: f32[16,1], index: 5, kind: input, shape index: {}]
  %s6 = inlined_call_operand.<no memory space> [shape: f32[1,1], index: 6, kind: input, shape index: {}]
  %s7 = inlined_call_operand.hbm [shape: f32[2,1,64], index: 7, kind: output, shape index: {}]
  %s8 = sld [smem:[#allocation0]]
  $region61: #{tpu_custom_call.1} parent=0
    _
  %s10 = ssub.s32 1, %s8
  %s11 = scalar_select 0, %s10, %s8
  %v12 = vstv %s6
  %13 = vst [vmem:[#allocation2] sm:$0x1] %v12
  $region1: #{tpu_custom_call.1} parent=0
    #allocation3 [shape = 'u8[1024]{0}', space=vmem, size = 0x400, scoped, tag = 'output window, operand 0']
    #allocation4 [shape = 's32[2]{0}', space=sflag, size = 0x8, scoped, tag = 'scoped memory for tpu_custom_call.1']
    %14 = vsyncpa [#allocation4], 0
    %s15 = scalar_lea.sflag [#allocation4], 1
    %16 = vsyncpa %s15, 0
    loop: start=0, step=1, limit=4
    $region2: #{tpu_custom_call.1} parent=1 // loop_pre_header
      _
    $region3: #{tpu_custom_call.1} parent=1 // loop_header
      %s18 = sphi 0, %s22
      %p19 = scmp.ge.s32.totalorder %s18, 4
      %s25 = sphi 0, %s37
      %s26 = sphi 0, %s33
      %s27 = sphi 0, %s25
      %s28 = sphi 0, %s26
      %s29 = sphi 0, %s27
      %s30 = sphi 0, %s28
      %s42 = sphi 0, %s44
      %s45 = sphi 0, %s42
      %s46 = sphi 0, %s45
      %s62 = sphi 0, %s46
      %s70 = sphi 0, %s72
      %s73 = sphi 0, %s70
      %s74 = sphi 0, %s73
      %s90 = sphi 0, %s74
      %s94 = sphi 0, %s94
      %s96 = sphi 0, %s94
      %s97 = sphi 0, %s96
      %s111 = sphi 0, %s97
      %s115 = sphi 0, %s115
      %s117 = sphi 0, %s115
      %s118 = sphi 0, %s117
      %s132 = sphi 0, %s118
      %s136 = sphi 0, %s136
      %s138 = sphi 0, %s136
      %s139 = sphi 0, %s138
      %s153 = sphi 0, %s139
      %s157 = sphi 0, %s157
      %s159 = sphi 0, %s157
      %s160 = sphi 0, %s159
      %s174 = sphi 0, %s160
      %s178 = sphi 0, %s178
      %s180 = sphi 0, %s178
      %s181 = sphi 0, %s180
      %s195 = sphi 0, %s181
      %s203 = sphi 0, %s205
      %s206 = sphi 0, %s203
      %s207 = sphi 0, %s206
      %s223 = sphi 0, %s207
    $region4: #{tpu_custom_call.1} parent=1 // loop_header_branch
      %21 = sbr.rel (%p19) target = $region8
    $region5: #{tpu_custom_call.1} parent=1 // loop_body
      %s23 = ssub.s32 %s18, 1
      %s24 = ssub.s32 %s18, 2
      %s31 = sadd.s32 1, %s26
      %p32 = scmp.ge.s32.totalorder %s31, 1
      %s33 = scalar_select %p32, 0, %s31
      %s34 = sadd.s32 1, %s25
      %s35 = scalar_select %p32, %s34, %s25
      %p36 = scmp.ge.s32.totalorder %s35, 2
      %s37 = scalar_select %p36, 0, %s35
      %s38 = ssub.s32 %s25, %s37
      %s39 = ssub.s32 %s26, %s33
      %s40 = sor.u32 %s38, %s39
      %p41 = scmp.eq.s32.totalorder %s40, 0
      %s43 = sadd.s32 %s42, 1
      %s44 = scalar_select %p41, %s42, %s43
      %p47 = pneg %p41
      %p48 = scmp.eq.s32.totalorder %s18, 1
      %p49 = por %p47, %p48
      %p50 = scmp.ne.s32.totalorder %s42, %s45
      %p51 = scmp.eq.s32.totalorder %s18, 0
      %p52 = por %p50, %p51
      %p53 = scmp.ne.s32.totalorder %s42, %s45
      %p54 = scmp.eq.s32.totalorder %s23, 1
      %p55 = por %p53, %p54
      %p56 = scmp.ne.s32.totalorder %s45, %s46
      %p57 = scmp.eq.s32.totalorder %s23, 0
      %p58 = por %p56, %p57
      %p59 = scmp.ne.s32.totalorder %s45, %s46
      %p60 = scmp.eq.s32.totalorder %s24, 1
      %p61 = por %p59, %p60
      %p63 = scmp.ne.s32.totalorder %s46, %s62
      %p64 = scmp.eq.s32.totalorder %s24, 0
      %p65 = por %p63, %p64
      %s66 = ssub.s32 %s25, %s37
      %s67 = ssub.s32 %s26, %s33
      %s68 = sor.u32 %s66, %s67
      %p69 = scmp.eq.s32.totalorder %s68, 0
      %s71 = sadd.s32 %s70, 1
      %s72 = scalar_select %p69, %s70, %s71
      %p75 = pneg %p69
      %p76 = scmp.eq.s32.totalorder %s18, 1
      %p77 = por %p75, %p76
      %p78 = scmp.ne.s32.totalorder %s70, %s73
      %p79 = scmp.eq.s32.totalorder %s18, 0
      %p80 = por %p78, %p79
      %p81 = scmp.ne.s32.totalorder %s70, %s73
      %p82 = scmp.eq.s32.totalorder %s23, 1
      %p83 = por %p81, %p82
      %p84 = scmp.ne.s32.totalorder %s73, %s74
      %p85 = scmp.eq.s32.totalorder %s23, 0
      %p86 = por %p84, %p85
      %p87 = scmp.ne.s32.totalorder %s73, %s74
      %p88 = scmp.eq.s32.totalorder %s24, 1
      %p89 = por %p87, %p88
      %p91 = scmp.ne.s32.totalorder %s74, %s90
      %p92 = scmp.eq.s32.totalorder %s24, 0
      %p93 = por %p91, %p92
      %s95 = sadd.s32 %s94, 1
      %p98 = scmp.eq.s32.totalorder %s18, 1
      %p99 = scmp.ne.s32.totalorder %s94, %s96
      %p100 = scmp.eq.s32.totalorder %s18, 0
      %p101 = por %p99, %p100
      %p102 = scmp.ne.s32.totalorder %s94, %s96
      %p103 = scmp.eq.s32.totalorder %s23, 1
      %p104 = por %p102, %p103
      %p105 = scmp.ne.s32.totalorder %s96, %s97
      %p106 = scmp.eq.s32.totalorder %s23, 0
      %p107 = por %p105, %p106
      %p108 = scmp.ne.s32.totalorder %s96, %s97
      %p109 = scmp.eq.s32.totalorder %s24, 1
      %p110 = por %p108, %p109
      %p112 = scmp.ne.s32.totalorder %s97, %s111
      %p113 = scmp.eq.s32.totalorder %s24, 0
      %p114 = por %p112, %p113
      %s116 = sadd.s32 %s115, 1
      %p119 = scmp.eq.s32.totalorder %s18, 1
      %p120 = scmp.ne.s32.totalorder %s115, %s117
      %p121 = scmp.eq.s32.totalorder %s18, 0
      %p122 = por %p120, %p121
      %p123 = scmp.ne.s32.totalorder %s115, %s117
      %p124 = scmp.eq.s32.totalorder %s23, 1
      %p125 = por %p123, %p124
      %p126 = scmp.ne.s32.totalorder %s117, %s118
      %p127 = scmp.eq.s32.totalorder %s23, 0
      %p128 = por %p126, %p127
      %p129 = scmp.ne.s32.totalorder %s117, %s118
      %p130 = scmp.eq.s32.totalorder %s24, 1
      %p131 = por %p129, %p130
      %p133 = scmp.ne.s32.totalorder %s118, %s132
      %p134 = scmp.eq.s32.totalorder %s24, 0
      %p135 = por %p133, %p134
      %s137 = sadd.s32 %s136, 1
      %p140 = scmp.eq.s32.totalorder %s18, 1
      %p141 = scmp.ne.s32.totalorder %s136, %s138
      %p142 = scmp.eq.s32.totalorder %s18, 0
      %p143 = por %p141, %p142
      %p144 = scmp.ne.s32.totalorder %s136, %s138
      %p145 = scmp.eq.s32.totalorder %s23, 1
      %p146 = por %p144, %p145
      %p147 = scmp.ne.s32.totalorder %s138, %s139
      %p148 = scmp.eq.s32.totalorder %s23, 0
      %p149 = por %p147, %p148
      %p150 = scmp.ne.s32.totalorder %s138, %s139
      %p151 = scmp.eq.s32.totalorder %s24, 1
      %p152 = por %p150, %p151
      %p154 = scmp.ne.s32.totalorder %s139, %s153
      %p155 = scmp.eq.s32.totalorder %s24, 0
      %p156 = por %p154, %p155
      %s158 = sadd.s32 %s157, 1
      %p161 = scmp.eq.s32.totalorder %s18, 1
      %p162 = scmp.ne.s32.totalorder %s157, %s159
      %p163 = scmp.eq.s32.totalorder %s18, 0
      %p164 = por %p162, %p163
      %p165 = scmp.ne.s32.totalorder %s157, %s159
      %p166 = scmp.eq.s32.totalorder %s23, 1
      %p167 = por %p165, %p166
      %p168 = scmp.ne.s32.totalorder %s159, %s160
      %p169 = scmp.eq.s32.totalorder %s23, 0
      %p170 = por %p168, %p169
      %p171 = scmp.ne.s32.totalorder %s159, %s160
      %p172 = scmp.eq.s32.totalorder %s24, 1
      %p173 = por %p171, %p172
      %p175 = scmp.ne.s32.totalorder %s160, %s174
      %p176 = scmp.eq.s32.totalorder %s24, 0
      %p177 = por %p175, %p176
      %s179 = sadd.s32 %s178, 1
      %p182 = scmp.eq.s32.totalorder %s18, 1
      %p183 = scmp.ne.s32.totalorder %s178, %s180
      %p184 = scmp.eq.s32.totalorder %s18, 0
      %p185 = por %p183, %p184
      %p186 = scmp.ne.s32.totalorder %s178, %s180
      %p187 = scmp.eq.s32.totalorder %s23, 1
      %p188 = por %p186, %p187
      %p189 = scmp.ne.s32.totalorder %s180, %s181
      %p190 = scmp.eq.s32.totalorder %s23, 0
      %p191 = por %p189, %p190
      %p192 = scmp.ne.s32.totalorder %s180, %s181
      %p193 = scmp.eq.s32.totalorder %s24, 1
      %p194 = por %p192, %p193
      %p196 = scmp.ne.s32.totalorder %s181, %s195
      %p197 = scmp.eq.s32.totalorder %s24, 0
      %p198 = por %p196, %p197
      %s199 = ssub.s32 %s25, %s37
      %s200 = ssub.s32 %s26, %s33
      %s201 = sor.u32 %s199, %s200
      %p202 = scmp.eq.s32.totalorder %s201, 0
      %s204 = sadd.s32 %s203, 1
      %s205 = scalar_select %p202, %s203, %s204
      %p208 = pneg %p202
      %p209 = scmp.eq.s32.totalorder %s18, 1
      %p210 = por %p208, %p209
      %p211 = scmp.ne.s32.totalorder %s203, %s206
      %p212 = scmp.eq.s32.totalorder %s18, 0
      %p213 = por %p211, %p212
      %p214 = scmp.ne.s32.totalorder %s203, %s206
      %p215 = scmp.eq.s32.totalorder %s23, 1
      %p216 = por %p214, %p215
      %p217 = scmp.ne.s32.totalorder %s206, %s207
      %p218 = scmp.eq.s32.totalorder %s23, 0
      %p219 = por %p217, %p218
      %p220 = scmp.ne.s32.totalorder %s206, %s207
      %p221 = scmp.eq.s32.totalorder %s24, 1
      %p222 = por %p220, %p221
      %p224 = scmp.ne.s32.totalorder %s207, %s223
      %p225 = scmp.eq.s32.totalorder %s24, 0
      %p226 = por %p224, %p225
      %p227 = scmp.le.s32.totalorder 1, %s18
      %p228 = scmp.lt.s32.totalorder %s18, 3
      %p229 = pnand %p227, %p228
      %p230 = pneg %p229
      // Predicated region
      $region9: #{tpu_custom_call.1} parent=5 // pred_check
        _
      $region10: #{tpu_custom_call.1} parent=5 // pred_check_branch
        %232 = sbr.rel (%p229) target = $region12
      $region11: #{tpu_custom_call.1} parent=5 // pred_region
        %s233 = ssub.s32 %s18, 1
        // Predicated region
        $region13: #{tpu_custom_call.1} parent=11 // pred_check
          %p234 = pneg %p107
        $region14: #{tpu_custom_call.1} parent=11 // pred_check_branch
          %236 = sbr.rel (%p234) target = $region16
        $region15: #{tpu_custom_call.1} parent=11 // pred_region
          _
        $region16: #{tpu_custom_call.1} parent=11 // pred_fallthru
          _
        // Predicated region
        $region17: #{tpu_custom_call.1} parent=11 // pred_check
          %p237 = pneg %p128
        $region18: #{tpu_custom_call.1} parent=11 // pred_check_branch
          %239 = sbr.rel (%p237) target = $region20
        $region19: #{tpu_custom_call.1} parent=11 // pred_region
          _
        $region20: #{tpu_custom_call.1} parent=11 // pred_fallthru
          _
        // Predicated region
        $region21: #{tpu_custom_call.1} parent=11 // pred_check
          %p240 = pneg %p149
        $region22: #{tpu_custom_call.1} parent=11 // pred_check_branch
          %242 = sbr.rel (%p240) target = $region24
        $region23: #{tpu_custom_call.1} parent=11 // pred_region
          _
        $region24: #{tpu_custom_call.1} parent=11 // pred_fallthru
          _
        // Predicated region
        $region25: #{tpu_custom_call.1} parent=11 // pred_check
          %p243 = pneg %p170
        $region26: #{tpu_custom_call.1} parent=11 // pred_check_branch
          %245 = sbr.rel (%p243) target = $region28
        $region27: #{tpu_custom_call.1} parent=11 // pred_region
          _
        $region28: #{tpu_custom_call.1} parent=11 // pred_fallthru
          _
        // Predicated region
        $region29: #{tpu_custom_call.1} parent=11 // pred_check
          %p246 = pneg %p191
        $region30: #{tpu_custom_call.1} parent=11 // pred_check_branch
          %248 = sbr.rel (%p246) target = $region32
        $region31: #{tpu_custom_call.1} parent=11 // pred_region
          _
        $region32: #{tpu_custom_call.1} parent=11 // pred_fallthru
          _
      $region12: #{tpu_custom_call.1} parent=5 // pred_fallthru
        _
      %p249 = scmp.lt.s32.totalorder %s18, 2
      // Predicated region
      $region33: #{tpu_custom_call.1} parent=5 // pred_check
        %p250 = pneg %p249
      $region34: #{tpu_custom_call.1} parent=5 // pred_check_branch
        %252 = sbr.rel (%p250) target = $region36
      $region35: #{tpu_custom_call.1} parent=5 // pred_region
        // Predicated region
        $region37: #{tpu_custom_call.1} parent=35 // pred_check
          %p253 = pneg %p52
        $region38: #{tpu_custom_call.1} parent=35 // pred_check_branch
          %255 = sbr.rel (%p253) target = $region40
        $region39: #{tpu_custom_call.1} parent=35 // pred_region
          %p256 = scmp.lt.s32.totalorder %s25, 1
          %s257 = scalar_select %p256, %s25, 1
          %p258 = scmp.lt.s32.totalorder %s26, 0
          %s259 = scalar_select %p258, %s26, 0
          %s260 = sadd.s32 %s259, %s257
          %s261 = smul.addr %s260, 8
          %s262 = scalar_lea.vmem %s0, %s261
        $region40: #{tpu_custom_call.1} parent=35 // pred_fallthru
          _
        // Predicated region
        $region41: #{tpu_custom_call.1} parent=35 // pred_check
          %p263 = pneg %p80
        $region42: #{tpu_custom_call.1} parent=35 // pred_check_branch
          %265 = sbr.rel (%p263) target = $region44
        $region43: #{tpu_custom_call.1} parent=35 // pred_region
          %p266 = scmp.lt.s32.totalorder %s25, 1
          %s267 = scalar_select %p266, %s25, 1
          %p268 = scmp.lt.s32.totalorder %s26, 0
          %s269 = scalar_select %p268, %s26, 0
          %s270 = sadd.s32 %s269, %s267
          %s271 = smul.addr %s270, 4
          %s272 = scalar_lea.vmem %s1, %s271
        $region44: #{tpu_custom_call.1} parent=35 // pred_fallthru
          _
      $region36: #{tpu_custom_call.1} parent=5 // pred_fallthru
        _
      %p273 = scmp.le.s32.totalorder 1, %s18
      %p274 = scmp.lt.s32.totalorder %s18, 3
      %p275 = pnand %p273, %p274
      %p276 = pneg %p275
      // Predicated region
      $region45: #{tpu_custom_call.1} parent=5 // pred_check
        _
      $region46: #{tpu_custom_call.1} parent=5 // pred_check_branch
        %278 = sbr.rel (%p275) target = $region48
      $region47: #{tpu_custom_call.1} parent=5 // pred_region
        %s279 = ssub.s32 %s18, 1
        %p280 = scmp.lt.s32.totalorder %s27, 1
        %s281 = scalar_select %p280, %s27, 1
        %p282 = scmp.lt.s32.totalorder %s28, 0
        %s283 = scalar_select %p282, %s28, 0
        %s284 = sadd.s32 %s283, %s281
        %s285 = smul.addr %s284, 8
        %s286 = scalar_lea.vmem %s0, %s285
        %p287 = pneg %p58
        %p288 = pneg %p55
        %p289 = scmp.lt.s32.totalorder %s27, 1
        %s290 = scalar_select %p289, %s27, 1
        %p291 = scmp.lt.s32.totalorder %s28, 0
        %s292 = scalar_select %p291, %s28, 0
        %s293 = sadd.s32 %s292, %s290
        %s294 = smul.addr %s293, 4
        %s295 = scalar_lea.vmem %s1, %s294
        %p296 = pneg %p86
        %p297 = pneg %p83
        %p298 = pneg %p107
        %p299 = pneg %p104
        %p300 = pneg %p128
        %p301 = pneg %p125
        %p302 = pneg %p149
        %p303 = pneg %p146
        %p304 = pneg %p170
        %p305 = pneg %p167
        %p306 = pneg %p191
        %p307 = pneg %p188
        %p308 = pneg %p219
        %p309 = pneg %p216
        %s310 = sand.u32 %s206, 1
        %s311 = scalar_lea.sflag [#allocation4], %s310
        %s312 = sand.u32 %s206, 1
        %s313 = scalar_lea.vmem [#allocation3], %s312
        %p314 = scmp.lt.s32.totalorder %s27, 1
        %s315 = scalar_select %p314, %s27, 1
        %p316 = scmp.lt.s32.totalorder %s28, 0
        %s317 = scalar_select %p316, %s28, 0
        %s318 = sadd.s32 %s317, %s315
        %s319 = smul.addr %s318, 8
        %s320 = scalar_lea.vmem %s0, %s319
        %p321 = scmp.lt.s32.totalorder %s27, 1
        %s322 = scalar_select %p321, %s27, 1
        %p323 = scmp.lt.s32.totalorder %s28, 0
        %s324 = scalar_select %p323, %s28, 0
        %s325 = sadd.s32 %s324, %s322
        %s326 = smul.addr %s325, 4
        %s327 = scalar_lea.vmem %s1, %s326
        %v328 = vld [vmem:[%s320] sm:$0xff]
        %v329 = vld [vmem:[%s327] sm:$0xf]
        %v330 = vld [vmem:[%s2] sm:$0xff]
        %v331 = vld [vmem:[%s2 + $0x8] sm:$0xff]
        %v332 = vld [vmem:[%s3] sm:$0xff]
        %v333 = vld [vmem:[%s3 + $0x8] sm:$0xff]
        %vm334 = vcmask 31744
        %v336 = vsel %vm334, %v332, 0
        %v339 = vsel %vm334, %v333, 0
        %vm341 = vcmask 1043456
        %v343 = vsel %vm341, %v329, 0
        %345 = vmatprep.subr.mxu0 0.0
        %346 = vmatpush1.msra.mxu0 %v343
        %347 = vmatprep.subr.mxu0 0.0
        %348 = vmatpush1.msra.mxu0 0.0
        %349 = vmatprep.subr.mxu0 0.0
        %350 = vmatpush1.msra.mxu0 0.0
        %351 = vmatprep.subr.mxu0 0.0
        %352 = vmatpush1.msra.mxu0 0.0
        %353 = vmatprep.subr.mxu0 0.0
        %354 = vmatpush1.msra.mxu0 0.0
        %355 = vmatprep.subr.mxu0 0.0
        %356 = vmatpush1.msra.mxu0 0.0
        %357 = vmatprep.subr.mxu0 0.0
        %358 = vmatpush1.msra.mxu0 0.0
        %359 = vmatprep.subr.mxu0 0.0
        %360 = vmatpush1.msra.mxu0 0.0
        %361 = vmatprep.subr.mxu0 0.0
        %362 = vmatpush1.msra.mxu0 0.0
        %363 = vmatprep.subr.mxu0 0.0
        %364 = vmatpush1.msra.mxu0 0.0
        %365 = vmatprep.subr.mxu0 0.0
        %366 = vmatpush1.msra.mxu0 0.0
        %367 = vmatprep.subr.mxu0 0.0
        %368 = vmatpush1.msra.mxu0 0.0
        %369 = vmatprep.subr.mxu0 0.0
        %370 = vmatpush1.msra.mxu0 0.0
        %371 = vmatprep.subr.mxu0 0.0
        %372 = vmatpush1.msra.mxu0 0.0
        %373 = vmatprep.subr.mxu0 0.0
        %374 = vmatpush1.msra.mxu0 0.0
        %375 = vmatprep.subr.mxu0 0.0
        %376 = vmatpush1.msra.mxu0 0.0
        %377 = vmatprep.subr.mxu0 0.0
        %378 = vmatpush1.msra.mxu0 0.0
        %379 = vmatprep.subr.mxu0 0.0
        %380 = vmatpush1.msra.mxu0 0.0
        %381 = vmatprep.subr.mxu0 0.0
        %382 = vmatpush1.msra.mxu0 0.0
        %383 = vmatprep.subr.mxu0 0.0
        %384 = vmatpush1.msra.mxu0 0.0
        %385 = vmatprep.subr.mxu0 0.0
        %386 = vmatpush1.msra.mxu0 0.0
        %387 = vmatprep.subr.mxu0 0.0
        %388 = vmatpush1.msra.mxu0 0.0
        %389 = vmatprep.subr.mxu0 0.0
        %390 = vmatpush1.msra.mxu0 0.0
        %391 = vmatprep.subr.mxu0 0.0
        %392 = vmatpush1.msra.mxu0 0.0
        %393 = vmatprep.subr.mxu0 0.0
        %394 = vmatpush1.msra.mxu0 0.0
        %395 = vmatprep.subr.mxu0 0.0
        %396 = vmatpush1.msra.mxu0 0.0
        %397 = vmatprep.subr.mxu0 0.0
        %398 = vmatpush1.msra.mxu0 0.0
        %399 = vmatprep.subr.mxu0 0.0
        %400 = vmatpush1.msra.mxu0 0.0
        %401 = vmatprep.subr.mxu0 0.0
        %402 = vmatpush1.msra.mxu0 0.0
        %403 = vmatprep.subr.mxu0 0.0
        %404 = vmatpush1.msra.mxu0 0.0
        %405 = vmatprep.subr.mxu0 0.0
        %406 = vmatpush1.msra.mxu0 0.0
        %407 = vmatprep.subr.mxu0 0.0
        %408 = vmatpush1.msra.mxu0 0.0
        %409 = vmatprep.mubr.f32.mxu0 0.0
        %410 = vmatmul.mubr.f32.gmra.mrb[0].mxu0 %v336
        %v411 = vpop.f32.mrb[0].mxu0
        %v412 = vadd.f32 0.0, %v411
        %v413 = vpop.f32.mrb[0].mxu0
        %414 = vmatprep.mubr.f32.mxu0 0.0
        %415 = vmatmul.mubr.f32.gmra.mrb[0].mxu0 %v339
        %v416 = vpop.f32.mrb[0].mxu0
        %v417 = vadd.f32 0.0, %v416
        %v418 = vpop.f32.mrb[0].mxu0
        %419 = vdwg.mxu0
        %vm420 = vcmask 64512
        %v422 = vsel %vm420, %v330, 0
        %v425 = vsel %vm420, %v331, 0
        %427 = vmatprep.subr.mxu0 0.0
        %428 = vmatpush1.msra.mxu0 %v328
        %429 = vmatprep.subr.mxu0 0.0
        %430 = vmatpush1.msra.mxu0 0.0
        %431 = vmatprep.subr.mxu0 0.0
        %432 = vmatpush1.msra.mxu0 0.0
        %433 = vmatprep.subr.mxu0 0.0
        %434 = vmatpush1.msra.mxu0 0.0
        %435 = vmatprep.subr.mxu0 0.0
        %436 = vmatpush1.msra.mxu0 0.0
        %437 = vmatprep.subr.mxu0 0.0
        %438 = vmatpush1.msra.mxu0 0.0
        %439 = vmatprep.subr.mxu0 0.0
        %440 = vmatpush1.msra.mxu0 0.0
        %441 = vmatprep.subr.mxu0 0.0
        %442 = vmatpush1.msra.mxu0 0.0
        %443 = vmatprep.subr.mxu0 0.0
        %444 = vmatpush1.msra.mxu0 0.0
        %445 = vmatprep.subr.mxu0 0.0
        %446 = vmatpush1.msra.mxu0 0.0
        %447 = vmatprep.subr.mxu0 0.0
        %448 = vmatpush1.msra.mxu0 0.0
        %449 = vmatprep.subr.mxu0 0.0
        %450 = vmatpush1.msra.mxu0 0.0
        %451 = vmatprep.subr.mxu0 0.0
        %452 = vmatpush1.msra.mxu0 0.0
        %453 = vmatprep.subr.mxu0 0.0
        %454 = vmatpush1.msra.mxu0 0.0
        %455 = vmatprep.subr.mxu0 0.0
        %456 = vmatpush1.msra.mxu0 0.0
        %457 = vmatprep.subr.mxu0 0.0
        %458 = vmatpush1.msra.mxu0 0.0
        %459 = vmatprep.subr.mxu0 0.0
        %460 = vmatpush1.msra.mxu0 0.0
        %461 = vmatprep.subr.mxu0 0.0
        %462 = vmatpush1.msra.mxu0 0.0
        %463 = vmatprep.subr.mxu0 0.0
        %464 = vmatpush1.msra.mxu0 0.0
        %465 = vmatprep.subr.mxu0 0.0
        %466 = vmatpush1.msra.mxu0 0.0
        %467 = vmatprep.subr.mxu0 0.0
        %468 = vmatpush1.msra.mxu0 0.0
        %469 = vmatprep.subr.mxu0 0.0
        %470 = vmatpush1.msra.mxu0 0.0
        %471 = vmatprep.subr.mxu0 0.0
        %472 = vmatpush1.msra.mxu0 0.0
        %473 = vmatprep.subr.mxu0 0.0
        %474 = vmatpush1.msra.mxu0 0.0
        %475 = vmatprep.subr.mxu0 0.0
        %476 = vmatpush1.msra.mxu0 0.0
        %477 = vmatprep.subr.mxu0 0.0
        %478 = vmatpush1.msra.mxu0 0.0
        %479 = vmatprep.subr.mxu0 0.0
        %480 = vmatpush1.msra.mxu0 0.0
        %481 = vmatprep.subr.mxu0 0.0
        %482 = vmatpush1.msra.mxu0 0.0
        %483 = vmatprep.subr.mxu0 0.0
        %484 = vmatpush1.msra.mxu0 0.0
        %485 = vmatprep.subr.mxu0 0.0
        %486 = vmatpush1.msra.mxu0 0.0
        %487 = vmatprep.subr.mxu0 0.0
        %488 = vmatpush1.msra.mxu0 0.0
        %489 = vmatprep.subr.mxu0 0.0
        %490 = vmatpush1.msra.mxu0 0.0
        %491 = vmatprep.mubr.f32.mxu0 0.0
        %492 = vmatmul.mubr.f32.gmra.mrb[0].mxu0 %v422
        %v493 = vpop.f32.mrb[0].mxu0
        %v494 = vadd.f32 %v412, %v493
        %v495 = vpop.f32.mrb[0].mxu0
        %496 = vmatprep.mubr.f32.mxu0 0.0
        %497 = vmatmul.mubr.f32.gmra.mrb[0].mxu0 %v425
        %v498 = vpop.f32.mrb[0].mxu0
        %v499 = vadd.f32 %v417, %v498
        %v500 = vpop.f32.mrb[0].mxu0
        %501 = vdwg.mxu0
        %v502 = vld [vmem:[%s4] sm:$0xff]
        %v503 = vld [vmem:[%s4 + $0x8] sm:$0xff]
        %505 = vset.pattern.permute.xlu0 0
        %506 = vperm.xlu0 %505, %v502
        %v507 = vpop.permute.xlu0 %506
        %510 = vset.pattern.permute.xlu0 0
        %511 = vperm.xlu0 %510, %v503
        %v512 = vpop.permute.xlu0 %511
        %v514 = vadd.f32 %v494, %v507
        %v515 = vadd.f32 %v499, %v512
        %v516 = vmax.f32 %v514, 0.0
        %v517 = vmax.f32 %v515, 0.0
        %v518 = vld [vmem:[%s5] sm:$0xff]
        %v519 = vld [vmem:[%s5 + $0x8] sm:$0xff]
        %521 = vset.pattern.permute.xlu0 0
        %522 = vperm.xlu0 %521, %v518
        %v523 = vpop.permute.xlu0 %522
        %526 = vset.pattern.permute.xlu0 0
        %527 = vperm.xlu0 %526, %v519
        %v528 = vpop.permute.xlu0 %527
        %v530 = vmul.f32 %v516, %v523
        %v531 = vmul.f32 %v517, %v528
        %vm532 = vcmask 523264
        %v533 = vsel %vm532, %v530, 0.0
        %v534 = vsel %vm532, %v531, 0.0
        %v535 = vadd.f32 %v533, %v534
        %v536 = vrot.slane %v535, 4
        %v537 = vadd.f32 %v535, %v536
        %v538 = vrot.slane %v537, 2
        %v539 = vadd.f32 %v537, %v538
        %v540 = vrot.slane %v539, 1
        %v541 = vadd.f32 %v539, %v540
        %v542 = vld [vmem:[#allocation2] sm:$0x1]
        %544 = vset.pattern.permute.xlu0 0
        %545 = vperm.xlu0 %544, %v542
        %v546 = vpop.permute.xlu0 %545
        %v548 = vlaneseq
        %v549 = vshrl.u32 %v548, 7
        %v550 = vsub.s32 0, %v549
        %v551 = vrot.slane %v546, %v550
        %v552 = vadd.f32 %v541, %v551
        %v553 = vxor.u32 %v552, 2147483648
        %v554 = vmul.f32 %v553, 1.442695
        %v555 = vpow.pop %v554
        %v556 = vadd.f32 %v555, 1.0
        %v557 = vrcp.pop %v556
        %v558 = vmul.f32 1.0, %v557
        %vm559 = vcmask 516096
        %560 = vst.msk [vmem:[%s313] sm:$0x1] %vm559, %v558
        %s561 = sand.u32 %s206, 1
        %s562 = scalar_lea.sflag [#allocation4], %s561
        %s563 = sand.u32 %s206, 1
        %s564 = scalar_lea.vmem [#allocation3], %s563
        // Predicated region
        $region49: #{tpu_custom_call.1} parent=47 // pred_check
          %p565 = pneg %p216
        $region50: #{tpu_custom_call.1} parent=47 // pred_check_branch
          %567 = sbr.rel (%p565) target = $region52
        $region51: #{tpu_custom_call.1} parent=47 // pred_region
          %s569 = ssub.s32 16, 16
          %570 = vsyncadd %s562, %s569
          %s571 = sadd.s32 %s28, %s27
          %s572 = smul.addr %s571, 16
          %s573 = scalar_lea.hbm %s7, %s572
          %s575 = sshll.u32 %s564, 4
          %s576 = int_to_ptr.vmem [resolvable:$true] %s575
          %578 = dma.vmem_to_hbm [thread:$0]  %s576, 16, %s573, %s562
        $region52: #{tpu_custom_call.1} parent=47 // pred_fallthru
          _
      $region48: #{tpu_custom_call.1} parent=5 // pred_fallthru
        _
      %p579 = scmp.le.s32.totalorder 2, %s18
      // Predicated region
      $region53: #{tpu_custom_call.1} parent=5 // pred_check
        %p580 = pneg %p579
      $region54: #{tpu_custom_call.1} parent=5 // pred_check_branch
        %582 = sbr.rel (%p580) target = $region56
      $region55: #{tpu_custom_call.1} parent=5 // pred_region
        %s583 = ssub.s32 %s18, 2
        // Predicated region
        $region57: #{tpu_custom_call.1} parent=55 // pred_check
          %p584 = pneg %p222
        $region58: #{tpu_custom_call.1} parent=55 // pred_check_branch
          %586 = sbr.rel (%p584) target = $region60
        $region59: #{tpu_custom_call.1} parent=55 // pred_region
          %s587 = sand.u32 %s207, 1
          %s588 = scalar_lea.sflag [#allocation4], %s587
          %s589 = sand.u32 %s207, 1
          %s590 = scalar_lea.vmem [#allocation3], %s589
          %591 = dma.done %s588, 16
        $region60: #{tpu_custom_call.1} parent=55 // pred_fallthru
          _
      $region56: #{tpu_custom_call.1} parent=5 // pred_fallthru
        _
    $region6: #{tpu_custom_call.1} parent=1 // loop_footer
      %s22 = sadd.s32 1, %s18
    $region7: #{tpu_custom_call.1} parent=1 // loop_footer_branch
      %17 = sbr.rel target = $region3
    $region8: #{tpu_custom_call.1} parent=1 // loop_exit
      _
    %592 = vsyncpa [#allocation4], 1
    %s593 = scalar_lea.sflag [#allocation4], 1
    %594 = vsyncpa %s593, 1

</llo_original>
